<compile_context>
chip_gen: v5e
topology: v5e:2x2
jax: 0.10.0
libtpu: 0.0.40
codegen_flags: <defaults>
</compile_context>

<pallas_src>
import functools

import jax
import jax.numpy as jnp
from jax import lax
from jax.experimental import pallas as pl
from jax.experimental.pallas import tpu as pltpu

LRELU_SLOPE = 0.2
BN_EPS = 1e-5


# ----------------------------------------------------------------------------
# Kernel: conv-as-matmul (bf16 x bf16 -> f32) + per-tile BN partial statistics.
# ----------------------------------------------------------------------------
def conv_stats_kernel(p_ref, w_ref, y_ref, sum_ref, m2_ref, *, m_total, tm):
    i = pl.program_id(0)

    # Conv3d as an MXU matmul with f32 accumulation, lane-dense Cout_pad.
    y = jnp.dot(p_ref[...], w_ref[...],
                preferred_element_type=jnp.float32)          # (TM, CP) f32

    # Store the un-normalized intermediate as bf16 (BN output is ~unit scale).
    y_ref[...] = y.astype(y_ref.dtype)

    # Per-tile (sum, centered-M2) statistics in f32, Welford/Chan style.
    # Zero-padded M rows contribute 0 to the sum; they must be masked out of
    # the centered second moment.
    rows_valid = jnp.minimum(tm, m_total - i * tm)            # int32 scalar >= 1
    row_ids = lax.broadcasted_iota(jnp.int32, (tm, 1), 0)
    mask = (row_ids < rows_valid).astype(jnp.float32)         # (TM, 1)

    s = jnp.sum(y, axis=0, keepdims=True)                     # (1, CP)
    mu = s * (1.0 / rows_valid.astype(jnp.float32))           # per-tile mean
    d = (y - mu) * mask
    m2 = jnp.sum(d * d, axis=0, keepdims=True)                # (1, CP)

    sum_ref[...] = s.reshape(1, 1, -1)
    m2_ref[...] = m2.reshape(1, 1, -1)


# ----------------------------------------------------------------------------
# Helpers
# ----------------------------------------------------------------------------
def _round_up(v, mult):
    return ((v + mult - 1) // mult) * mult


def _im2col_3d(x, ksize, stride, pad):
    """x: (N, Cin, D, H, W) -> (N*Do*Ho*Wo, Cin*k^3) patches matrix (x dtype)."""
    n, cin, d, h, w = x.shape
    xp = jnp.pad(x, ((0, 0), (0, 0), (pad, pad), (pad, pad), (pad, pad)))
    do = (d + 2 * pad - ksize) // stride + 1
    ho = (h + 2 * pad - ksize) // stride + 1
    wo = (w + 2 * pad - ksize) // stride + 1
    cols = []
    for kd in range(ksize):
        for kh in range(ksize):
            for kw in range(ksize):
                cols.append(
                    xp[:, :, kd:kd + stride * do:stride,
                             kh:kh + stride * ho:stride,
                             kw:kw + stride * wo:stride])
    # (N, Cin, k^3, Do, Ho, Wo); k_flat ordered (kd, kh, kw)
    p = jnp.stack(cols, axis=2)
    # -> (N, Do, Ho, Wo, Cin, k^3) -> (M, Cin*k^3); Cin slowest matches
    # PyTorch weight.reshape(Cout, Cin*kd*kh*kw)
    p = p.transpose(0, 3, 4, 5, 1, 2).reshape(n * do * ho * wo, cin * ksize ** 3)
    return p, (do, ho, wo)


def _vmem_capacity_bytes():
    try:
        return int(pltpu.get_tpu_info().vmem_capacity_bytes)
    except Exception:
        return 64 << 20   # conservative default (v7x per-TC)


def _budgets():
    """(tile working-set budget, vmem_limit cap) per TPU generation."""
    cap = _vmem_capacity_bytes()
    if cap >= (96 << 20):          # v5e / v6e: 128 MiB physical VMEM
        return 32 << 20, 96 << 20
    return 14 << 20, 44 << 20      # v7x: 64 MiB per TC, leave scratch headroom


def _choose_tm(m, k, cp, budget):
    """Pick the M tile: 512-1024 rows when the budget allows, shrunk to fit a
    per-generation VMEM budget, and split into >= 2 tiles so the 'parallel'
    axis feeds both v7x TensorCores when there is enough work."""
    weight_bytes = 2 * (k * cp * 2)          # resident bf16 weight (2 buffers)
    per_row = 2 * (k * 2) + 2 * (cp * 2)     # dbuf bf16 patches + dbuf bf16 y
    tm = 1024
    while tm > 64 and weight_bytes + tm * per_row > budget:
        tm //= 2
    m_up = _round_up(max(m, 1), 16)          # bf16 sublane packing granularity
    tm = min(tm, m_up)
    if m_up // tm < 2 and m_up >= 32:        # guarantee >= 2 tiles (dual-TC)
        tm = _round_up(-(-m_up // 2), 16)
    return tm


def _vmem_limit(tm, k, cp, cap_limit):
    need = (2 * tm * k * 2          # double-buffered bf16 patch tiles
            + 2 * k * cp * 2        # resident bf16 weight (2 buffers)
            + 2 * tm * cp * 2       # double-buffered bf16 output tiles
            + 4 * 2 * cp * 4)       # stats blocks
    return int(min(max(need + (8 << 20), 32 << 20), cap_limit))


# ----------------------------------------------------------------------------
# Public entry point
# ----------------------------------------------------------------------------
def encoder_block(x, weight, bias, gamma, beta, *, ksize=4, stride=2, pad=1):
    """x: (N, Cin, D, H, W) NCDHW. weight: (Cout, Cin, k, k, k) (PyTorch OIDHW).
    Returns (N, Cout, Do, Ho, Wo), matching EncoderBlock.forward with
    training-mode BatchNorm statistics."""
    del bias  # cancels exactly under training-mode BatchNorm (see header).
    n, cin = x.shape[:2]
    cout = weight.shape[0]

    # LeakyReLU + bf16 cast BEFORE im2col: halves im2col HBM traffic and keeps
    # the kernel a pure matmul pass (lrelu(0) == 0 keeps zero padding intact).
    fx = jnp.where(x >= 0, x, LRELU_SLOPE * x).astype(jnp.bfloat16)
    patches, (do, ho, wo) = _im2col_3d(fx, ksize, stride, pad)
    m, k = patches.shape
    cp = _round_up(max(cout, 128), 128)               # lane-dense Cout

    budget, vmem_cap = _budgets()
    tm = _choose_tm(m, k, cp, budget)
    m_pad = _round_up(m, tm)
    ntiles = m_pad // tm
    if m_pad > m:
        patches = jnp.pad(patches, ((0, m_pad - m), (0, 0)))

    w2d = weight.reshape(cout, cin * ksize ** 3).T.astype(jnp.bfloat16)  # (K, Cout)
    w2d = jnp.pad(w2d, ((0, 0), (0, cp - cout)))                         # (K, CP)

    cost = pl.CostEstimate(
        flops=2 * m_pad * k * cp,
        transcendentals=0,
        bytes_accessed=m_pad * k * 2 + k * cp * 2 + m_pad * cp * 2
                       + 2 * ntiles * cp * 4,
    )

    kernel = functools.partial(conv_stats_kernel, m_total=m, tm=tm)
    y2d, psum, pm2 = pl.pallas_call(
        kernel,
        out_shape=(jax.ShapeDtypeStruct((m_pad, cp), jnp.bfloat16),
                   jax.ShapeDtypeStruct((ntiles, 1, cp), jnp.float32),
                   jax.ShapeDtypeStruct((ntiles, 1, cp), jnp.float32)),
        grid=(ntiles,),
        in_specs=[pl.BlockSpec((tm, k), lambda i: (i, 0)),
                  pl.BlockSpec((k, cp), lambda i: (0, 0))],   # weight resident
        out_specs=(pl.BlockSpec((tm, cp), lambda i: (i, 0)),
                   pl.BlockSpec((1, 1, cp), lambda i: (i, 0, 0)),
                   pl.BlockSpec((1, 1, cp), lambda i: (i, 0, 0))),
        compiler_params=pltpu.CompilerParams(
            dimension_semantics=("parallel",),
            vmem_limit_bytes=_vmem_limit(tm, k, cp, vmem_cap)),
        cost_estimate=cost,
    )(patches, w2d)

    # Chan-style combine of per-tile (count, sum, M2) -> mean / biased var,
    # then per-channel affine params.  O(ntiles * CP) work.
    counts = jnp.array([min(tm, m - i * tm) for i in range(ntiles)],
                       dtype=jnp.float32)                       # (ntiles,)
    s = psum[:, 0, :]                                           # (ntiles, CP)
    m2 = pm2[:, 0, :]                                           # (ntiles, CP)
    mean_i = s / counts[:, None]
    mean = jnp.sum(s, axis=0) / m                               # real M, not M_pad
    var = (jnp.sum(m2, axis=0)
           + jnp.sum(counts[:, None] * (mean_i - mean) ** 2, axis=0)) / m
    var = jnp.maximum(var, 0.0)

    g_pad = jnp.pad(gamma.astype(jnp.float32), (0, cp - cout))
    b_pad = jnp.pad(beta.astype(jnp.float32), (0, cp - cout))
    scale = g_pad * lax.rsqrt(var + BN_EPS)
    shift = b_pad - mean * scale

    # Fused epilogue in plain JAX: affine + slice + reshape + layout transpose
    # (no second pallas_call, no extra HBM round trip of the intermediate).
    out2d = y2d.astype(jnp.float32) * scale[None, :] + shift[None, :]
    out2d = out2d[:m, :cout]
    # TODO(synk): return NDHWC (drop the transpose) when the consumer is
    # channels-last friendly (e.g. the next EncoderBlock's im2col).
    return out2d.reshape(n, do, ho, wo, cout).transpose(0, 4, 1, 2, 3)


# ----------------------------------------------------------------------------
# Plain-JAX reference of the PyTorch forward (training-mode BN, f32 conv).
# ----------------------------------------------------------------------------
def encoder_block_reference(x, weight, bias, gamma, beta):
    fx = jnp.where(x >= 0, x, LRELU_SLOPE * x)
    y = lax.conv_general_dilated(
        fx, weight, window_strides=(2, 2, 2), padding=[(1, 1)] * 3,
        dimension_numbers=('NCDHW', 'OIDHW', 'NCDHW'))
    y = y + bias.reshape(1, -1, 1, 1, 1)
    mean = jnp.mean(y, axis=(0, 2, 3, 4), keepdims=True)
    var = jnp.mean((y - mean) ** 2, axis=(0, 2, 3, 4), keepdims=True)
    y_hat = (y - mean) * lax.rsqrt(var + BN_EPS)
    return y_hat * gamma.reshape(1, -1, 1, 1, 1) + beta.reshape(1, -1, 1, 1, 1)


if __name__ == "__main__":
    # Small shapes consistent with the module: NCDHW input, inplanes=4,
    # outplanes=8, spatial 8^3 -> output spatial 4^3.
    N, CIN, COUT, D, H, W = 2, 4, 8, 8, 8, 8
    KSIZE = 4

    key = jax.random.PRNGKey(0)
    kx, kw, kb, kg, kbeta = jax.random.split(key, 5)
    x = jax.random.normal(kx, (N, CIN, D, H, W), dtype=jnp.float32)
    weight = 0.1 * jax.random.normal(kw, (COUT, CIN, KSIZE, KSIZE, KSIZE),
                                     dtype=jnp.float32)
    bias = 0.1 * jax.random.normal(kb, (COUT,), dtype=jnp.float32)
    gamma = 1.0 + 0.1 * jax.random.normal(kg, (COUT,), dtype=jnp.float32)
    beta = 0.1 * jax.random.normal(kbeta, (COUT,), dtype=jnp.float32)

    out = encoder_block(x, weight, bias, gamma, beta)
    out = jax.block_until_ready(out)

    ref = encoder_block_reference(x, weight, bias, gamma, beta)
    assert out.shape == (N, COUT, D // 2, H // 2, W // 2)
    # bf16 operands / bf16 intermediate vs. f32 reference; output is
    # BN-normalized to ~unit scale, so absolute tolerance is meaningful.
    assert jnp.allclose(out, ref, atol=5e-2, rtol=5e-2), (
        float(jnp.max(jnp.abs(out - ref))))

    print("KERNEL_OK")
</pallas_src>

<mosaic_0001>
module attributes {stable_mosaic.version = 11 : i64} {
  func.func @conv_stats_kernel(%arg0: i32, %arg1: memref<64x256xbf16, #tpu.memory_space<vmem>>, %arg2: memref<256x128xbf16, #tpu.memory_space<vmem>>, %arg3: memref<64x128xbf16, #tpu.memory_space<vmem>>, %arg4: memref<1x1x128xf32, #tpu.memory_space<vmem>>, %arg5: memref<1x1x128xf32, #tpu.memory_space<vmem>>) attributes {dimension_semantics = [#tpu.dimension_semantics<parallel>], iteration_bounds = array<i64: 2>, scalar_prefetch = 0 : i64, scratch_operands = 0 : i64, tpu.core_type = #tpu.core_type<tc>, window_params = [{transform_indices = @transform_0, window_bounds = array<i64: 64, 256>}, {pipeline_mode = #tpu.pipeline_mode<synchronous>, transform_indices = @transform_1, window_bounds = array<i64: 256, 128>}, {transform_indices = @transform_2, window_bounds = array<i64: 64, 128>}, {transform_indices = @transform_3, window_bounds = array<i64: 1, 1, 128>}, {transform_indices = @transform_4, window_bounds = array<i64: 1, 1, 128>}]} {
    %c0 = arith.constant 0 : index
    %c0_0 = arith.constant 0 : index
    %0 = vector.load %arg1[%c0, %c0_0] : memref<64x256xbf16, #tpu.memory_space<vmem>>, vector<64x256xbf16>
    %c0_1 = arith.constant 0 : index
    %c0_2 = arith.constant 0 : index
    %1 = vector.load %arg2[%c0_1, %c0_2] : memref<256x128xbf16, #tpu.memory_space<vmem>>, vector<256x128xbf16>
    %cst = arith.constant dense<0.000000e+00> : vector<64x128xf32>
    %2 = tpu.matmul %0, %1, %cst {dimension_numbers = #tpu.dot_dimension_numbers<[1], [0], [0], [1], [0, 0, 1, 1], [], []>} : vector<64x256xbf16>, vector<256x128xbf16>, vector<64x128xf32> -> vector<64x128xf32>
    %3 = arith.truncf %2 : vector<64x128xf32> to vector<64x128xbf16>
    %c0_3 = arith.constant 0 : index
    %c0_4 = arith.constant 0 : index
    %4 = vector.load %arg3[%c0_3, %c0_4] : memref<64x128xbf16, #tpu.memory_space<vmem>>, vector<64x128xbf16>
    tpu.vector_store %arg3[%c0_3, %c0_4], %3 {strides = array<i32>} : memref<64x128xbf16, #tpu.memory_space<vmem>>, vector<64x128xbf16>,
    %c64_i32 = arith.constant 64 : i32
    %5 = arith.muli %arg0, %c64_i32 : i32
    %c128_i32 = arith.constant 128 : i32
    %6 = arith.subi %c128_i32, %5 : i32
    %c64_i32_5 = arith.constant 64 : i32
    %7 = arith.minsi %c64_i32_5, %6 : i32
    %8 = tpu.iota {dimensions = array<i32: 0>} : vector<64x1xi32>
    %9 = vector.broadcast %7 : i32 to vector<64x1xi32>
    %10 = arith.cmpi slt, %8, %9 : vector<64x1xi32>
    %11 = arith.extui %10 : vector<64x1xi1> to vector<64x1xi32>
    %12 = arith.sitofp %11 : vector<64x1xi32> to vector<64x1xf32>
    %cst_6 = arith.constant dense<0.000000e+00> : vector<128xf32>
    %13 = vector.multi_reduction <add>, %2, %cst_6 [0] : vector<64x128xf32> to vector<128xf32>
    %14 = vector.shape_cast %13 : vector<128xf32> to vector<1x128xf32>
    %15 = arith.sitofp %7 : i32 to f32
    %cst_7 = arith.constant 1.000000e+00 : f32
    %16 = arith.divf %cst_7, %15 : f32
    %17 = vector.broadcast %16 : f32 to vector<1x128xf32>
    %18 = arith.mulf %14, %17 : vector<1x128xf32>
    %19 = vector.broadcast %18 : vector<1x128xf32> to vector<64x128xf32>
    %20 = arith.subf %2, %19 : vector<64x128xf32>
    %21 = vector.broadcast %12 : vector<64x1xf32> to vector<64x128xf32>
    %22 = arith.mulf %20, %21 : vector<64x128xf32>
    %23 = arith.mulf %22, %22 : vector<64x128xf32>
    %cst_8 = arith.constant dense<0.000000e+00> : vector<128xf32>
    %24 = vector.multi_reduction <add>, %23, %cst_8 [0] : vector<64x128xf32> to vector<128xf32>
    %25 = vector.shape_cast %24 : vector<128xf32> to vector<1x128xf32>
    %26 = vector.shape_cast %14 : vector<1x128xf32> to vector<1x1x128xf32>
    %c0_9 = arith.constant 0 : index
    %c0_10 = arith.constant 0 : index
    %c0_11 = arith.constant 0 : index
    %27 = vector.load %arg4[%c0_9, %c0_10, %c0_11] : memref<1x1x128xf32, #tpu.memory_space<vmem>>, vector<1x1x128xf32>
    tpu.vector_store %arg4[%c0_9, %c0_10, %c0_11], %26 {strides = array<i32>} : memref<1x1x128xf32, #tpu.memory_space<vmem>>, vector<1x1x128xf32>,
    %28 = vector.shape_cast %25 : vector<1x128xf32> to vector<1x1x128xf32>
    %c0_12 = arith.constant 0 : index
    %c0_13 = arith.constant 0 : index
    %c0_14 = arith.constant 0 : index
    %29 = vector.load %arg5[%c0_12, %c0_13, %c0_14] : memref<1x1x128xf32, #tpu.memory_space<vmem>>, vector<1x1x128xf32>
    tpu.vector_store %arg5[%c0_12, %c0_13, %c0_14], %28 {strides = array<i32>} : memref<1x1x128xf32, #tpu.memory_space<vmem>>, vector<1x1x128xf32>,
    return
  }
  func.func @transform_0(%arg0: i32) -> (i32, i32) {
    %c0_i32 = arith.constant 0 : i32
    %c0_i32_0 = arith.constant 0 : i32
    return %arg0, %c0_i32 : i32, i32
  }
  func.func @transform_1(%arg0: i32) -> (i32, i32) {
    %c0_i32 = arith.constant 0 : i32
    %c0_i32_0 = arith.constant 0 : i32
    %c0_i32_1 = arith.constant 0 : i32
    return %c0_i32, %c0_i32_0 : i32, i32
  }
  func.func @transform_2(%arg0: i32) -> (i32, i32) {
    %c0_i32 = arith.constant 0 : i32
    %c0_i32_0 = arith.constant 0 : i32
    return %arg0, %c0_i32 : i32, i32
  }
  func.func @transform_3(%arg0: i32) -> (i32, i32, i32) {
    %c0_i32 = arith.constant 0 : i32
    %c0_i32_0 = arith.constant 0 : i32
    %c0_i32_1 = arith.constant 0 : i32
    return %arg0, %c0_i32, %c0_i32_0 : i32, i32, i32
  }
  func.func @transform_4(%arg0: i32) -> (i32, i32, i32) {
    %c0_i32 = arith.constant 0 : i32
    %c0_i32_0 = arith.constant 0 : i32
    %c0_i32_1 = arith.constant 0 : i32
    return %arg0, %c0_i32, %c0_i32_0 : i32, i32, i32
  }
}

</mosaic_0001>

<llo_original>
// kernel: tpu_custom_call.1
$region0: #{tpu_custom_call.1}
  #allocation0 [shape = 'u32[]', space=smem, size = 0x4, offset = 0x4, fixed_abs, tag = 'smem constant byte address 0x4 - core index']
  #allocation1 [shape = 'u32[72,128]{1,0:T(1,128)}', space=vmem, size = 0x9000, scoped, tag = 'internal scratch']
  %s0 = inlined_call_operand.hbm [shape: bf16[128,256], index: 0, kind: input, shape index: {}]
  %s1 = inlined_call_operand.hbm [shape: bf16[256,128], index: 1, kind: input, shape index: {}]
  %s2 = inlined_call_operand.hbm [shape: bf16[128,128], index: 2, kind: output, shape index: {0}]
  %s3 = inlined_call_operand.hbm [shape: f32[2,1,128], index: 3, kind: output, shape index: {1}]
  %s4 = inlined_call_operand.hbm [shape: f32[2,1,128], index: 4, kind: output, shape index: {2}]
  %5 = xla_tuple %s2, %s3, %s4
  %s6 = sld [smem:[#allocation0]]
  $region65: #{tpu_custom_call.1} parent=0
    _
  %s8 = ssub.s32 1, %s6
  %s9 = scalar_select 0, %s8, %s6
  $region1: #{tpu_custom_call.1} parent=0
    #allocation2 [shape = 'u8[65536]{0}', space=vmem, size = 0x10000, scoped, tag = 'input window, operand 0']
    #allocation3 [shape = 's32[2]{0}', space=sflag, size = 0x8, scoped, tag = 'scoped memory for tpu_custom_call.1']
    #allocation4 [shape = 's32[2]{0}', space=sflag, size = 0x8, scoped, tag = 'scoped memory for tpu_custom_call.1']
    #allocation5 [shape = 'u8[65536]{0}', space=vmem, size = 0x10000, scoped, tag = 'input window, operand 1, single buffered']
    #allocation6 [shape = 's32[1]{0}', space=sflag, size = 0x4, scoped, tag = 'scoped memory for tpu_custom_call.1']
    #allocation7 [shape = 'u8[32768]{0}', space=vmem, size = 0x8000, scoped, tag = 'output window, operand 0']
    #allocation8 [shape = 'u8[1024]{0}', space=vmem, size = 0x400, scoped, tag = 'output window, operand 1']
    #allocation9 [shape = 's32[2]{0}', space=sflag, size = 0x8, scoped, tag = 'scoped memory for tpu_custom_call.1']
    #allocation10 [shape = 'u8[1024]{0}', space=vmem, size = 0x400, scoped, tag = 'output window, operand 2']
    %10 = vsyncpa [#allocation3], 0
    %s11 = scalar_lea.sflag [#allocation3], 1
    %12 = vsyncpa %s11, 0
    %13 = vsyncpa [#allocation6], 0
    %14 = vsyncpa [#allocation4], 0
    %s15 = scalar_lea.sflag [#allocation4], 1
    %16 = vsyncpa %s15, 0
    %17 = vsyncpa [#allocation9], 0
    %s18 = scalar_lea.sflag [#allocation9], 1
    %19 = vsyncpa %s18, 0
    loop: start=0, step=1, limit=4
    $region2: #{tpu_custom_call.1} parent=1 // loop_pre_header
      _
    $region3: #{tpu_custom_call.1} parent=1 // loop_header
      %s21 = sphi 0, %s25
      %p22 = scmp.ge.s32.totalorder %s21, 4
      %s31 = sphi 0, %s33
      %s34 = sphi 0, %s31
      %s35 = sphi 0, %s34
      %s51 = sphi 0, %s35
      %s55 = sphi 0, %s55
      %s57 = sphi 0, %s55
      %s58 = sphi 0, %s57
      %s72 = sphi 0, %s58
      %s78 = sphi 0, %s80
      %s81 = sphi 0, %s78
      %s82 = sphi 0, %s81
      %s98 = sphi 0, %s82
      %s104 = sphi 0, %s106
      %s107 = sphi 0, %s104
      %s108 = sphi 0, %s107
      %s124 = sphi 0, %s108
      %s130 = sphi 0, %s132
      %s133 = sphi 0, %s130
      %s134 = sphi 0, %s133
      %s150 = sphi 0, %s134
    $region4: #{tpu_custom_call.1} parent=1 // loop_header_branch
      %24 = sbr.rel (%p22) target = $region8
    $region5: #{tpu_custom_call.1} parent=1 // loop_body
      %s26 = ssub.s32 %s21, 1
      %s27 = ssub.s32 %s21, 2
      %s28 = sadd.s32 %s21, 1
      %s29 = ssub.s32 %s21, %s28
      %p30 = scmp.eq.s32.totalorder %s29, 0
      %s32 = sadd.s32 %s31, 1
      %s33 = scalar_select %p30, %s31, %s32
      %p36 = pneg %p30
      %p37 = scmp.eq.s32.totalorder %s21, 1
      %p38 = por %p36, %p37
      %p39 = scmp.ne.s32.totalorder %s31, %s34
      %p40 = scmp.eq.s32.totalorder %s21, 0
      %p41 = por %p39, %p40
      %p42 = scmp.ne.s32.totalorder %s31, %s34
      %p43 = scmp.eq.s32.totalorder %s26, 1
      %p44 = por %p42, %p43
      %p45 = scmp.ne.s32.totalorder %s34, %s35
      %p46 = scmp.eq.s32.totalorder %s26, 0
      %p47 = por %p45, %p46
      %p48 = scmp.ne.s32.totalorder %s34, %s35
      %p49 = scmp.eq.s32.totalorder %s27, 1
      %p50 = por %p48, %p49
      %p52 = scmp.ne.s32.totalorder %s35, %s51
      %p53 = scmp.eq.s32.totalorder %s27, 0
      %p54 = por %p52, %p53
      %s56 = sadd.s32 %s55, 1
      %p59 = scmp.eq.s32.totalorder %s21, 1
      %p60 = scmp.ne.s32.totalorder %s55, %s57
      %p61 = scmp.eq.s32.totalorder %s21, 0
      %p62 = por %p60, %p61
      %p63 = scmp.ne.s32.totalorder %s55, %s57
      %p64 = scmp.eq.s32.totalorder %s26, 1
      %p65 = por %p63, %p64
      %p66 = scmp.ne.s32.totalorder %s57, %s58
      %p67 = scmp.eq.s32.totalorder %s26, 0
      %p68 = por %p66, %p67
      %p69 = scmp.ne.s32.totalorder %s57, %s58
      %p70 = scmp.eq.s32.totalorder %s27, 1
      %p71 = por %p69, %p70
      %p73 = scmp.ne.s32.totalorder %s58, %s72
      %p74 = scmp.eq.s32.totalorder %s27, 0
      %p75 = por %p73, %p74
      %s76 = ssub.s32 %s21, %s28
      %p77 = scmp.eq.s32.totalorder %s76, 0
      %s79 = sadd.s32 %s78, 1
      %s80 = scalar_select %p77, %s78, %s79
      %p83 = pneg %p77
      %p84 = scmp.eq.s32.totalorder %s21, 1
      %p85 = por %p83, %p84
      %p86 = scmp.ne.s32.totalorder %s78, %s81
      %p87 = scmp.eq.s32.totalorder %s21, 0
      %p88 = por %p86, %p87
      %p89 = scmp.ne.s32.totalorder %s78, %s81
      %p90 = scmp.eq.s32.totalorder %s26, 1
      %p91 = por %p89, %p90
      %p92 = scmp.ne.s32.totalorder %s81, %s82
      %p93 = scmp.eq.s32.totalorder %s26, 0
      %p94 = por %p92, %p93
      %p95 = scmp.ne.s32.totalorder %s81, %s82
      %p96 = scmp.eq.s32.totalorder %s27, 1
      %p97 = por %p95, %p96
      %p99 = scmp.ne.s32.totalorder %s82, %s98
      %p100 = scmp.eq.s32.totalorder %s27, 0
      %p101 = por %p99, %p100
      %s102 = ssub.s32 %s21, %s28
      %p103 = scmp.eq.s32.totalorder %s102, 0
      %s105 = sadd.s32 %s104, 1
      %s106 = scalar_select %p103, %s104, %s105
      %p109 = pneg %p103
      %p110 = scmp.eq.s32.totalorder %s21, 1
      %p111 = por %p109, %p110
      %p112 = scmp.ne.s32.totalorder %s104, %s107
      %p113 = scmp.eq.s32.totalorder %s21, 0
      %p114 = por %p112, %p113
      %p115 = scmp.ne.s32.totalorder %s104, %s107
      %p116 = scmp.eq.s32.totalorder %s26, 1
      %p117 = por %p115, %p116
      %p118 = scmp.ne.s32.totalorder %s107, %s108
      %p119 = scmp.eq.s32.totalorder %s26, 0
      %p120 = por %p118, %p119
      %p121 = scmp.ne.s32.totalorder %s107, %s108
      %p122 = scmp.eq.s32.totalorder %s27, 1
      %p123 = por %p121, %p122
      %p125 = scmp.ne.s32.totalorder %s108, %s124
      %p126 = scmp.eq.s32.totalorder %s27, 0
      %p127 = por %p125, %p126
      %s128 = ssub.s32 %s21, %s28
      %p129 = scmp.eq.s32.totalorder %s128, 0
      %s131 = sadd.s32 %s130, 1
      %s132 = scalar_select %p129, %s130, %s131
      %p135 = pneg %p129
      %p136 = scmp.eq.s32.totalorder %s21, 1
      %p137 = por %p135, %p136
      %p138 = scmp.ne.s32.totalorder %s130, %s133
      %p139 = scmp.eq.s32.totalorder %s21, 0
      %p140 = por %p138, %p139
      %p141 = scmp.ne.s32.totalorder %s130, %s133
      %p142 = scmp.eq.s32.totalorder %s26, 1
      %p143 = por %p141, %p142
      %p144 = scmp.ne.s32.totalorder %s133, %s134
      %p145 = scmp.eq.s32.totalorder %s26, 0
      %p146 = por %p144, %p145
      %p147 = scmp.ne.s32.totalorder %s133, %s134
      %p148 = scmp.eq.s32.totalorder %s27, 1
      %p149 = por %p147, %p148
      %p151 = scmp.ne.s32.totalorder %s134, %s150
      %p152 = scmp.eq.s32.totalorder %s27, 0
      %p153 = por %p151, %p152
      %p154 = scmp.le.s32.totalorder 1, %s21
      %p155 = scmp.lt.s32.totalorder %s21, 3
      %p156 = pnand %p154, %p155
      %p157 = pneg %p156
      // Predicated region
      $region9: #{tpu_custom_call.1} parent=5 // pred_check
        _
      $region10: #{tpu_custom_call.1} parent=5 // pred_check_branch
        %159 = sbr.rel (%p156) target = $region12
      $region11: #{tpu_custom_call.1} parent=5 // pred_region
        %s160 = ssub.s32 %s21, 1
        // Predicated region
        $region13: #{tpu_custom_call.1} parent=11 // pred_check
          %p161 = pneg %p68
        $region14: #{tpu_custom_call.1} parent=11 // pred_check_branch
          %163 = sbr.rel (%p161) target = $region16
        $region15: #{tpu_custom_call.1} parent=11 // pred_region
          %165 = vsyncadd [#allocation6], 0
          %s166 = sshll.u32 %s1, 4
          %s167 = int_to_ptr.hbm [resolvable:$true] %s166
          %s168 = sshll.u32 [#allocation5], 4
          %s169 = int_to_ptr.vmem [resolvable:$true] %s168
          %174 = dma.hbm_to_vmem [thread:$0]  %s167, 2048, %s169, [#allocation6], 64, 64, 4
        $region16: #{tpu_custom_call.1} parent=11 // pred_fallthru
          _
      $region12: #{tpu_custom_call.1} parent=5 // pred_fallthru
        _
      %p175 = scmp.lt.s32.totalorder %s21, 2
      // Predicated region
      $region17: #{tpu_custom_call.1} parent=5 // pred_check
        %p176 = pneg %p175
      $region18: #{tpu_custom_call.1} parent=5 // pred_check_branch
        %178 = sbr.rel (%p176) target = $region20
      $region19: #{tpu_custom_call.1} parent=5 // pred_region
        // Predicated region
        $region21: #{tpu_custom_call.1} parent=19 // pred_check
          %p179 = pneg %p41
        $region22: #{tpu_custom_call.1} parent=19 // pred_check_branch
          %181 = sbr.rel (%p179) target = $region24
        $region23: #{tpu_custom_call.1} parent=19 // pred_region
          %s182 = sand.u32 %s31, 1
          %s183 = scalar_lea.sflag [#allocation3], %s182
          %s184 = sand.u32 %s31, 1
          %s185 = smul.addr %s184, 64
          %s186 = scalar_lea.vmem [#allocation2], %s185
          %s187 = smul.u32 8, %s21
          %189 = vsyncadd %s183, 0
          %s190 = smul.addr %s187, 2
          %s191 = smul.addr %s190, 4
          %s192 = scalar_lea.hbm %s0, %s191
          %s193 = sshll.u32 %s192, 4
          %s194 = int_to_ptr.hbm [resolvable:$true] %s193
          %s195 = sshll.u32 %s186, 4
          %s196 = int_to_ptr.vmem [resolvable:$true] %s195
          %201 = dma.hbm_to_vmem [thread:$0]  %s194, 1024, %s196, %s183, 128, 128, 8
        $region24: #{tpu_custom_call.1} parent=19 // pred_fallthru
          _
      $region20: #{tpu_custom_call.1} parent=5 // pred_fallthru
        _
      %p202 = scmp.le.s32.totalorder 1, %s21
      %p203 = scmp.lt.s32.totalorder %s21, 3
      %p204 = pnand %p202, %p203
      %p205 = pneg %p204
      // Predicated region
      $region25: #{tpu_custom_call.1} parent=5 // pred_check
        _
      $region26: #{tpu_custom_call.1} parent=5 // pred_check_branch
        %207 = sbr.rel (%p204) target = $region28
      $region27: #{tpu_custom_call.1} parent=5 // pred_region
        %s208 = ssub.s32 %s21, 1
        %s209 = sand.u32 %s34, 1
        %s210 = scalar_lea.sflag [#allocation3], %s209
        %s211 = sand.u32 %s34, 1
        %s212 = smul.addr %s211, 64
        %s213 = scalar_lea.vmem [#allocation2], %s212
        // Predicated region
        $region29: #{tpu_custom_call.1} parent=27 // pred_check
          %p214 = pneg %p47
        $region30: #{tpu_custom_call.1} parent=27 // pred_check_branch
          %216 = sbr.rel (%p214) target = $region32
        $region31: #{tpu_custom_call.1} parent=27 // pred_region
          %218 = dma.done %s210, 1024
        $region32: #{tpu_custom_call.1} parent=27 // pred_fallthru
          _
        // Predicated region
        $region33: #{tpu_custom_call.1} parent=27 // pred_check
          %p219 = pneg %p68
        $region34: #{tpu_custom_call.1} parent=27 // pred_check_branch
          %221 = sbr.rel (%p219) target = $region36
        $region35: #{tpu_custom_call.1} parent=27 // pred_region
          %223 = dma.done [#allocation6], 2048
        $region36: #{tpu_custom_call.1} parent=27 // pred_fallthru
          _
        %s224 = sand.u32 %s34, 1
        %s225 = scalar_lea.sflag [#allocation3], %s224
        %s226 = sand.u32 %s34, 1
        %s227 = smul.addr %s226, 64
        %s228 = scalar_lea.vmem [#allocation2], %s227
        %p229 = pneg %p47
        %p230 = pneg %p44
        %p231 = pneg %p68
        %p232 = pneg %p65
        %p233 = pneg %p94
        %p234 = pneg %p91
        %s235 = sand.u32 %s81, 1
        %s236 = scalar_lea.sflag [#allocation4], %s235
        %s237 = sand.u32 %s81, 1
        %s238 = smul.addr %s237, 32
        %s239 = scalar_lea.vmem [#allocation7], %s238
        %p240 = pneg %p120
        %p241 = pneg %p117
        %s242 = sand.u32 %s26, 1
        %s243 = scalar_lea.sflag [#allocation9], %s242
        %s244 = sand.u32 %s107, 1
        %s245 = scalar_lea.vmem [#allocation8], %s244
        %p246 = pneg %p146
        %p247 = pneg %p143
        %s248 = sand.u32 %s26, 1
        %s249 = scalar_lea.sflag [#allocation9], %s248
        %s250 = sand.u32 %s133, 1
        %s251 = scalar_lea.vmem [#allocation10], %s250
        %s252 = smul.u32 8, %s26
        %s253 = smul.u32 8, %s26
        %v254 = vld [vmem:[%s213] sm:$0xff]
        %v255 = vld [vmem:[%s213 + $0x8] sm:$0xff]
        %v256 = vld [vmem:[%s213 + $0x10] sm:$0xff]
        %v257 = vld [vmem:[%s213 + $0x18] sm:$0xff]
        %v258 = vld [vmem:[%s213 + $0x20] sm:$0xff]
        %v259 = vld [vmem:[%s213 + $0x28] sm:$0xff]
        %v260 = vld [vmem:[%s213 + $0x30] sm:$0xff]
        %v261 = vld [vmem:[%s213 + $0x38] sm:$0xff]
        %v262 = vld [vmem:[#allocation5] sm:$0xf]
        %v263 = vld [vmem:[#allocation5 + $0x4] sm:$0xf]
        %v264 = vld [vmem:[#allocation5 + $0x8] sm:$0xf]
        %v265 = vld [vmem:[#allocation5 + $0xc] sm:$0xf]
        %v266 = vld [vmem:[#allocation5 + $0x10] sm:$0xf]
        %v267 = vld [vmem:[#allocation5 + $0x14] sm:$0xf]
        %v268 = vld [vmem:[#allocation5 + $0x18] sm:$0xf]
        %v269 = vld [vmem:[#allocation5 + $0x1c] sm:$0xf]
        %v270 = vld [vmem:[#allocation5 + $0x20] sm:$0xf]
        %v271 = vld [vmem:[#allocation5 + $0x24] sm:$0xf]
        %v272 = vld [vmem:[#allocation5 + $0x28] sm:$0xf]
        %v273 = vld [vmem:[#allocation5 + $0x2c] sm:$0xf]
        %v274 = vld [vmem:[#allocation5 + $0x30] sm:$0xf]
        %v275 = vld [vmem:[#allocation5 + $0x34] sm:$0xf]
        %v276 = vld [vmem:[#allocation5 + $0x38] sm:$0xf]
        %v277 = vld [vmem:[#allocation5 + $0x3c] sm:$0xf]
        %v278 = vld [vmem:[#allocation5 + $0x40] sm:$0xf]
        %v279 = vld [vmem:[#allocation5 + $0x44] sm:$0xf]
        %v280 = vld [vmem:[#allocation5 + $0x48] sm:$0xf]
        %v281 = vld [vmem:[#allocation5 + $0x4c] sm:$0xf]
        %v282 = vld [vmem:[#allocation5 + $0x50] sm:$0xf]
        %v283 = vld [vmem:[#allocation5 + $0x54] sm:$0xf]
        %v284 = vld [vmem:[#allocation5 + $0x58] sm:$0xf]
        %v285 = vld [vmem:[#allocation5 + $0x5c] sm:$0xf]
        %v286 = vld [vmem:[#allocation5 + $0x60] sm:$0xf]
        %v287 = vld [vmem:[#allocation5 + $0x64] sm:$0xf]
        %v288 = vld [vmem:[#allocation5 + $0x68] sm:$0xf]
        %v289 = vld [vmem:[#allocation5 + $0x6c] sm:$0xf]
        %v290 = vld [vmem:[#allocation5 + $0x70] sm:$0xf]
        %v291 = vld [vmem:[#allocation5 + $0x74] sm:$0xf]
        %v292 = vld [vmem:[#allocation5 + $0x78] sm:$0xf]
        %v293 = vld [vmem:[#allocation5 + $0x7c] sm:$0xf]
        %v302 = vunpack.c.l.b16 %v254
        %v303 = vunpack.c.h.b16 %v254
        %v304 = vunpack.c.l.b16 %v255
        %v305 = vunpack.c.h.b16 %v255
        %v306 = vunpack.c.l.b16 %v256
        %v307 = vunpack.c.h.b16 %v256
        %v308 = vunpack.c.l.b16 %v257
        %v309 = vunpack.c.h.b16 %v257
        %v310 = vunpack.c.l.b16 %v258
        %v311 = vunpack.c.h.b16 %v258
        %v312 = vunpack.c.l.b16 %v259
        %v313 = vunpack.c.h.b16 %v259
        %v314 = vunpack.c.l.b16 %v260
        %v315 = vunpack.c.h.b16 %v260
        %v316 = vunpack.c.l.b16 %v261
        %v317 = vunpack.c.h.b16 %v261
        %v318 = vpack.c.b16 %v304, %v302
        %v319 = vpack.c.b16 %v305, %v303
        %v320 = vpack.c.b16 %v308, %v306
        %v321 = vpack.c.b16 %v309, %v307
        %v322 = vpack.c.b16 %v312, %v310
        %v323 = vpack.c.b16 %v313, %v311
        %v324 = vpack.c.b16 %v316, %v314
        %v325 = vpack.c.b16 %v317, %v315
        %v366 = vunpack.c.l.b16 %v262
        %v367 = vunpack.c.l.b16 %v263
        %v368 = vunpack.c.l.b16 %v264
        %v369 = vunpack.c.l.b16 %v265
        %v370 = vunpack.c.l.b16 %v266
        %v371 = vunpack.c.l.b16 %v267
        %v372 = vunpack.c.l.b16 %v268
        %v373 = vunpack.c.l.b16 %v269
        %v374 = vunpack.c.l.b16 %v270
        %v375 = vunpack.c.l.b16 %v271
        %v376 = vunpack.c.l.b16 %v272
        %v377 = vunpack.c.l.b16 %v273
        %v378 = vunpack.c.l.b16 %v274
        %v379 = vunpack.c.l.b16 %v275
        %v380 = vunpack.c.l.b16 %v276
        %v381 = vunpack.c.l.b16 %v277
        %v382 = vunpack.c.l.b16 %v278
        %v383 = vunpack.c.l.b16 %v279
        %v384 = vunpack.c.l.b16 %v280
        %v385 = vunpack.c.l.b16 %v281
        %v386 = vunpack.c.l.b16 %v282
        %v387 = vunpack.c.l.b16 %v283
        %v388 = vunpack.c.l.b16 %v284
        %v389 = vunpack.c.l.b16 %v285
        %v390 = vunpack.c.l.b16 %v286
        %v391 = vunpack.c.l.b16 %v287
        %v392 = vunpack.c.l.b16 %v288
        %v393 = vunpack.c.l.b16 %v289
        %v394 = vunpack.c.l.b16 %v290
        %v395 = vunpack.c.l.b16 %v291
        %v396 = vunpack.c.l.b16 %v292
        %v397 = vunpack.c.l.b16 %v293
        %v398 = vpack.c.b16 %v367, %v366
        %v399 = vpack.c.b16 %v369, %v368
        %v400 = vpack.c.b16 %v371, %v370
        %v401 = vpack.c.b16 %v373, %v372
        %v402 = vpack.c.b16 %v375, %v374
        %v403 = vpack.c.b16 %v377, %v376
        %v404 = vpack.c.b16 %v379, %v378
        %v405 = vpack.c.b16 %v381, %v380
        %v406 = vpack.c.b16 %v383, %v382
        %v407 = vpack.c.b16 %v385, %v384
        %v408 = vpack.c.b16 %v387, %v386
        %v409 = vpack.c.b16 %v389, %v388
        %v410 = vpack.c.b16 %v391, %v390
        %v411 = vpack.c.b16 %v393, %v392
        %v412 = vpack.c.b16 %v395, %v394
        %v413 = vpack.c.b16 %v397, %v396
        %430 = vmatpush.bf16.msra.mxu0 %v405
        %431 = vmatpush.bf16.msra.mxu0 %v404
        %432 = vmatpush.bf16.msra.mxu0 %v403
        %433 = vmatpush.bf16.msra.mxu0 %v402
        %434 = vmatpush.bf16.msra.mxu0 %v401
        %435 = vmatpush.bf16.msra.mxu0 %v400
        %436 = vmatpush.bf16.msra.mxu0 %v399
        %437 = vmatpush.bf16.msra.mxu0 %v398
        %438 = vmatmul.bf16.gmra.mxu0 %v318
        %v439 = vpop.f32.mrf.mxu0
        %v440 = vadd.f32 0.0, %v439
        %v441 = vpop.f32.mrf.mxu0
        %v442 = vadd.f32 0.0, %v441
        %443 = vmatmul.bf16.gmra.mxu0 %v320
        %v444 = vpop.f32.mrf.mxu0
        %v445 = vadd.f32 0.0, %v444
        %v446 = vpop.f32.mrf.mxu0
        %v447 = vadd.f32 0.0, %v446
        %448 = vmatmul.bf16.gmra.mxu0 %v322
        %v449 = vpop.f32.mrf.mxu0
        %v450 = vadd.f32 0.0, %v449
        %v451 = vpop.f32.mrf.mxu0
        %v452 = vadd.f32 0.0, %v451
        %453 = vmatmul.bf16.gmra.mxu0 %v324
        %v454 = vpop.f32.mrf.mxu0
        %v455 = vadd.f32 0.0, %v454
        %v456 = vpop.f32.mrf.mxu0
        %v457 = vadd.f32 0.0, %v456
        %458 = vdwg.mxu0
        %459 = vmatpush.bf16.msra.mxu0 %v413
        %460 = vmatpush.bf16.msra.mxu0 %v412
        %461 = vmatpush.bf16.msra.mxu0 %v411
        %462 = vmatpush.bf16.msra.mxu0 %v410
        %463 = vmatpush.bf16.msra.mxu0 %v409
        %464 = vmatpush.bf16.msra.mxu0 %v408
        %465 = vmatpush.bf16.msra.mxu0 %v407
        %466 = vmatpush.bf16.msra.mxu0 %v406
        %467 = vmatmul.bf16.gmra.mxu0 %v319
        %v468 = vpop.f32.mrf.mxu0
        %v469 = vadd.f32 %v440, %v468
        %v470 = vpop.f32.mrf.mxu0
        %v471 = vadd.f32 %v442, %v470
        %472 = vmatmul.bf16.gmra.mxu0 %v321
        %v473 = vpop.f32.mrf.mxu0
        %v474 = vadd.f32 %v445, %v473
        %v475 = vpop.f32.mrf.mxu0
        %v476 = vadd.f32 %v447, %v475
        %477 = vmatmul.bf16.gmra.mxu0 %v323
        %v478 = vpop.f32.mrf.mxu0
        %v479 = vadd.f32 %v450, %v478
        %v480 = vpop.f32.mrf.mxu0
        %v481 = vadd.f32 %v452, %v480
        %482 = vmatmul.bf16.gmra.mxu0 %v325
        %v483 = vpop.f32.mrf.mxu0
        %v484 = vadd.f32 %v455, %v483
        %v485 = vpop.f32.mrf.mxu0
        %v486 = vadd.f32 %v457, %v485
        %487 = vdwg.mxu0
        %v488 = vpack.c.bf16 %v469, %v469
        %v489 = vpack.c.bf16 %v471, %v471
        %v490 = vpack.c.bf16 %v474, %v474
        %v491 = vpack.c.bf16 %v476, %v476
        %v492 = vpack.c.bf16 %v479, %v479
        %v493 = vpack.c.bf16 %v481, %v481
        %v494 = vpack.c.bf16 %v484, %v484
        %v495 = vpack.c.bf16 %v486, %v486
        %496 = vst [vmem:[%s239] sm:$0xf] %v488
        %497 = vst [vmem:[%s239 + $0x4] sm:$0xf] %v489
        %498 = vst [vmem:[%s239 + $0x8] sm:$0xf] %v490
        %499 = vst [vmem:[%s239 + $0xc] sm:$0xf] %v491
        %500 = vst [vmem:[%s239 + $0x10] sm:$0xf] %v492
        %501 = vst [vmem:[%s239 + $0x14] sm:$0xf] %v493
        %502 = vst [vmem:[%s239 + $0x18] sm:$0xf] %v494
        %503 = vst [vmem:[%s239 + $0x1c] sm:$0xf] %v495
        %s504 = smul.u32 %s26, 64
        %s505 = ssub.s32 128, %s504
        %p506 = scmp.lt.s32.totalorder %s505, 64
        %s507 = scalar_select %p506, %s505, 64
        %v508 = vlaneseq
        %v509 = vshrl.u32 %v508, 7
        %v510 = vadd.s32 %v509, 8
        %v511 = vadd.s32 %v509, 16
        %v512 = vadd.s32 %v509, 24
        %v513 = vadd.s32 %v509, 32
        %v514 = vadd.s32 %v509, 40
        %v515 = vadd.s32 %v509, 48
        %v516 = vadd.s32 %v509, 56
        %v517 = vstv %s507
        %vm518 = vcmp.lt.s32.totalorder %v509, %v517
        %vm519 = vcmp.lt.s32.totalorder %v510, %v517
        %vm520 = vcmp.lt.s32.totalorder %v511, %v517
        %vm521 = vcmp.lt.s32.totalorder %v512, %v517
        %vm522 = vcmp.lt.s32.totalorder %v513, %v517
        %vm523 = vcmp.lt.s32.totalorder %v514, %v517
        %vm524 = vcmp.lt.s32.totalorder %v515, %v517
        %vm525 = vcmp.lt.s32.totalorder %v516, %v517
        %v526 = vsel %vm518, 1, 0
        %v527 = vsel %vm519, 1, 0
        %v528 = vsel %vm520, 1, 0
        %v529 = vsel %vm521, 1, 0
        %v530 = vsel %vm522, 1, 0
        %v531 = vsel %vm523, 1, 0
        %v532 = vsel %vm524, 1, 0
        %v533 = vsel %vm525, 1, 0
        %v534 = vcvt.s32.f32 %v526
        %v535 = vcvt.s32.f32 %v527
        %v536 = vcvt.s32.f32 %v528
        %v537 = vcvt.s32.f32 %v529
        %v538 = vcvt.s32.f32 %v530
        %v539 = vcvt.s32.f32 %v531
        %v540 = vcvt.s32.f32 %v532
        %v541 = vcvt.s32.f32 %v533
        %v542 = vadd.f32 %v469, %v471
        %v543 = vadd.f32 %v542, %v474
        %v544 = vadd.f32 %v543, %v476
        %v545 = vadd.f32 %v544, %v479
        %v546 = vadd.f32 %v545, %v481
        %v547 = vadd.f32 %v546, %v484
        %v548 = vadd.f32 %v547, %v486
        %v549 = vrot.slane %v548, 4
        %v550 = vadd.f32 %v548, %v549
        %v551 = vrot.slane %v550, 2
        %v552 = vadd.f32 %v550, %v551
        %v553 = vrot.slane %v552, 1
        %v554 = vadd.f32 %v552, %v553
        %s555 = scvt.s32.f32 %s507
        %v556 = vstv %s555
        %v557 = vrcp.pop %v556
        %v558 = vmul.f32 %v556, %v557
        %v559 = vsub.f32 1.0, %v558
        %v560 = vmul.f32 %v557, %v559
        %v561 = vadd.f32 %v557, %v560
        %vm562 = vweird.f32 %v556
        %vm563 = vweird.f32 %v557
        %vm564 = vmor %vm562, %vm563
        %v565 = vsel %vm564, %v557, %v561
        %v566 = vand.u32 2147483647, %v556
        %vm567 = vcmp.eq.f32.partialorder %v566, 8.507059e+37
        %v568 = vand.u32 %v556, 2147483648
        %v569 = vor.u32 1.1754944e-38, %v568
        %v570 = vsel %vm567, %v569, %v565
        %s571 = vtos %v570
        %v572 = vstv %s571
        %v573 = vmul.f32 %v554, %v572
        %v574 = vsub.f32 %v469, %v573
        %v575 = vsub.f32 %v471, %v573
        %v576 = vsub.f32 %v474, %v573
        %v577 = vsub.f32 %v476, %v573
        %v578 = vsub.f32 %v479, %v573
        %v579 = vsub.f32 %v481, %v573
        %v580 = vsub.f32 %v484, %v573
        %v581 = vsub.f32 %v486, %v573
        %v582 = vmul.f32 %v574, %v534
        %v583 = vmul.f32 %v575, %v535
        %v584 = vmul.f32 %v576, %v536
        %v585 = vmul.f32 %v577, %v537
        %v586 = vmul.f32 %v578, %v538
        %v587 = vmul.f32 %v579, %v539
        %v588 = vmul.f32 %v580, %v540
        %v589 = vmul.f32 %v581, %v541
        %v590 = vmul.f32 %v582, %v582
        %v591 = vmul.f32 %v583, %v583
        %v592 = vmul.f32 %v584, %v584
        %v593 = vmul.f32 %v585, %v585
        %v594 = vmul.f32 %v586, %v586
        %v595 = vmul.f32 %v587, %v587
        %v596 = vmul.f32 %v588, %v588
        %v597 = vmul.f32 %v589, %v589
        %v598 = vadd.f32 %v590, %v591
        %v599 = vadd.f32 %v598, %v592
        %v600 = vadd.f32 %v599, %v593
        %v601 = vadd.f32 %v600, %v594
        %v602 = vadd.f32 %v601, %v595
        %v603 = vadd.f32 %v602, %v596
        %v604 = vadd.f32 %v603, %v597
        %v605 = vrot.slane %v604, 4
        %v606 = vadd.f32 %v604, %v605
        %v607 = vrot.slane %v606, 2
        %v608 = vadd.f32 %v606, %v607
        %v609 = vrot.slane %v608, 1
        %v610 = vadd.f32 %v608, %v609
        %611 = vst [vmem:[%s245] sm:$0x1] %v554
        %612 = vst [vmem:[%s251] sm:$0x1] %v610
        %s613 = sand.u32 %s81, 1
        %s614 = scalar_lea.sflag [#allocation4], %s613
        %s615 = sand.u32 %s81, 1
        %s616 = smul.addr %s615, 32
        %s617 = scalar_lea.vmem [#allocation7], %s616
        %s618 = sand.u32 %s26, 1
        %s619 = scalar_lea.sflag [#allocation9], %s618
        %s620 = sand.u32 %s107, 1
        %s621 = scalar_lea.vmem [#allocation8], %s620
        %s622 = sand.u32 %s26, 1
        %s623 = scalar_lea.sflag [#allocation9], %s622
        %s624 = sand.u32 %s133, 1
        %s625 = scalar_lea.vmem [#allocation10], %s624
        // Predicated region
        $region37: #{tpu_custom_call.1} parent=27 // pred_check
          %p626 = pneg %p91
        $region38: #{tpu_custom_call.1} parent=27 // pred_check_branch
          %628 = sbr.rel (%p626) target = $region40
        $region39: #{tpu_custom_call.1} parent=27 // pred_region
          %s629 = smul.u32 8, %s26
          %631 = vsyncadd %s614, 0
          %s632 = smul.addr %s629, 4
          %s633 = scalar_lea.hbm %s2, %s632
          %s634 = sshll.u32 %s617, 4
          %s635 = int_to_ptr.vmem [resolvable:$true] %s634
          %s636 = sshll.u32 %s633, 4
          %s637 = int_to_ptr.hbm [resolvable:$true] %s636
          %642 = dma.vmem_to_hbm [thread:$0]  %s635, 512, %s637, %s614, 64, 64, 4
        $region40: #{tpu_custom_call.1} parent=27 // pred_fallthru
          _
        // Predicated region
        $region41: #{tpu_custom_call.1} parent=27 // pred_check
          %p643 = pneg %p117
        $region42: #{tpu_custom_call.1} parent=27 // pred_check_branch
          %645 = sbr.rel (%p643) target = $region44
        $region43: #{tpu_custom_call.1} parent=27 // pred_region
          %647 = vsyncadd %s619, 0
          %s648 = scalar_lea.hbm %s3, %s26
          %s650 = sshll.u32 %s621, 4
          %s651 = int_to_ptr.vmem [resolvable:$true] %s650
          %s652 = sshll.u32 %s648, 4
          %s653 = int_to_ptr.hbm [resolvable:$true] %s652
          %655 = dma.vmem_to_hbm [thread:$0]  %s651, 16, %s653, %s619
        $region44: #{tpu_custom_call.1} parent=27 // pred_fallthru
          _
        // Predicated region
        $region45: #{tpu_custom_call.1} parent=27 // pred_check
          %p656 = pneg %p143
        $region46: #{tpu_custom_call.1} parent=27 // pred_check_branch
          %658 = sbr.rel (%p656) target = $region48
        $region47: #{tpu_custom_call.1} parent=27 // pred_region
          %660 = vsyncadd %s623, 0
          %s661 = scalar_lea.hbm %s4, %s26
          %s663 = sshll.u32 %s625, 4
          %s664 = int_to_ptr.vmem [resolvable:$true] %s663
          %s665 = sshll.u32 %s661, 4
          %s666 = int_to_ptr.hbm [resolvable:$true] %s665
          %668 = dma.vmem_to_hbm [thread:$0]  %s664, 16, %s666, %s623
        $region48: #{tpu_custom_call.1} parent=27 // pred_fallthru
          _
      $region28: #{tpu_custom_call.1} parent=5 // pred_fallthru
        _
      %p669 = scmp.le.s32.totalorder 2, %s21
      // Predicated region
      $region49: #{tpu_custom_call.1} parent=5 // pred_check
        %p670 = pneg %p669
      $region50: #{tpu_custom_call.1} parent=5 // pred_check_branch
        %672 = sbr.rel (%p670) target = $region52
      $region51: #{tpu_custom_call.1} parent=5 // pred_region
        %s673 = ssub.s32 %s21, 2
        // Predicated region
        $region53: #{tpu_custom_call.1} parent=51 // pred_check
          %p674 = pneg %p97
        $region54: #{tpu_custom_call.1} parent=51 // pred_check_branch
          %676 = sbr.rel (%p674) target = $region56
        $region55: #{tpu_custom_call.1} parent=51 // pred_region
          %s677 = sand.u32 %s82, 1
          %s678 = scalar_lea.sflag [#allocation4], %s677
          %s679 = sand.u32 %s82, 1
          %s680 = smul.addr %s679, 32
          %s681 = scalar_lea.vmem [#allocation7], %s680
          %683 = dma.done %s678, 512
        $region56: #{tpu_custom_call.1} parent=51 // pred_fallthru
          _
        // Predicated region
        $region57: #{tpu_custom_call.1} parent=51 // pred_check
          %p684 = pneg %p123
        $region58: #{tpu_custom_call.1} parent=51 // pred_check_branch
          %686 = sbr.rel (%p684) target = $region60
        $region59: #{tpu_custom_call.1} parent=51 // pred_region
          %s687 = sand.u32 %s27, 1
          %s688 = scalar_lea.sflag [#allocation9], %s687
          %s689 = sand.u32 %s108, 1
          %s690 = scalar_lea.vmem [#allocation8], %s689
          %692 = dma.done %s688, 16
        $region60: #{tpu_custom_call.1} parent=51 // pred_fallthru
          _
        // Predicated region
        $region61: #{tpu_custom_call.1} parent=51 // pred_check
          %p693 = pneg %p149
        $region62: #{tpu_custom_call.1} parent=51 // pred_check_branch
          %695 = sbr.rel (%p693) target = $region64
        $region63: #{tpu_custom_call.1} parent=51 // pred_region
          %s696 = sand.u32 %s27, 1
          %s697 = scalar_lea.sflag [#allocation9], %s696
          %s698 = sand.u32 %s134, 1
          %s699 = scalar_lea.vmem [#allocation10], %s698
          %701 = dma.done %s697, 16
        $region64: #{tpu_custom_call.1} parent=51 // pred_fallthru
          _
      $region52: #{tpu_custom_call.1} parent=5 // pred_fallthru
        _
    $region6: #{tpu_custom_call.1} parent=1 // loop_footer
      %s25 = sadd.s32 1, %s21
    $region7: #{tpu_custom_call.1} parent=1 // loop_footer_branch
      %20 = sbr.rel target = $region3
    $region8: #{tpu_custom_call.1} parent=1 // loop_exit
      _
    %702 = vsyncpa [#allocation3], 1
    %s703 = scalar_lea.sflag [#allocation3], 1
    %704 = vsyncpa %s703, 1
    %705 = vsyncpa [#allocation6], 1
    %706 = vsyncpa [#allocation4], 1
    %s707 = scalar_lea.sflag [#allocation4], 1
    %708 = vsyncpa %s707, 1
    %709 = vsyncpa [#allocation9], 1
    %s710 = scalar_lea.sflag [#allocation9], 1
    %711 = vsyncpa %s710, 1

</llo_original>
